<compile_context>
chip_gen: v7x
topology: tpu7x:2x2x1
jax: 0.10.0
libtpu: 0.0.40
codegen_flags: <defaults>
</compile_context>

<pallas_src>
import jax
import jax.numpy as jnp
from jax.experimental import pallas as pl
from jax.experimental.pallas import tpu as pltpu


def _identity_kernel(x_ref, o_ref):
    # Pure pass-through of the current VMEM tile (100% memory-bound).
    o_ref[...] = x_ref[...]


_LANE_WIDTHS = (2048, 1024, 512, 256, 128)   # lane-dense last-dim candidates
_MIB = 1024 * 1024


def _pick_lane_width(n_elems: int):
    for w in _LANE_WIDTHS:
        if n_elems % w == 0:
            return w
    return None


def _largest_divisor_leq(n: int, cap: int) -> int:
    for w in range(min(cap, n), 0, -1):
        if n % w == 0:
            return w
    return 1


def _vmem_budget():
    """Returns (target tile bytes, scoped VMEM limit bytes) per detected chip."""
    try:
        vmem_cap = int(pltpu.get_tpu_info().vmem_capacity_bytes)
    except Exception:
        vmem_cap = None
    if vmem_cap is None:
        # Conservative defaults, safe on every generation (<= 64 MiB VMEM).
        return 4 * _MIB, 40 * _MIB
    if vmem_cap <= 64 * _MIB:
        # v7x: 64 MiB VMEM per TensorCore -> 2 arrays x 2 bufs x 6 MiB = 24 MiB.
        return 6 * _MIB, 48 * _MIB
    # v5e / v6e: 128 MiB VMEM -> 8 MiB tiles (32 MiB of pipeline buffers).
    return 8 * _MIB, 48 * _MIB


def _choose_tile_rows(rows: int, row_bytes: int, sublane_mult: int,
                      target_tile_bytes: int) -> int:
    """Pick the sublane (second-to-last) tile extent."""
    tile_r = max(sublane_mult, target_tile_bytes // max(row_bytes, 1))
    tile_r = max(sublane_mult, (tile_r // sublane_mult) * sublane_mult)
    if tile_r >= rows:
        # One tile would hold everything; split into >= 2 grid steps when
        # possible so both v7x TensorCores share the bandwidth-bound copy.
        if rows >= 2 * sublane_mult:
            half = -(-rows // 2)                               # ceil(rows/2)
            return -(-half // sublane_mult) * sublane_mult     # round up
        return rows
    # Prefer a tile_r that divides rows exactly -> no masked tail tile.
    lo = max(sublane_mult, tile_r // 2)
    t = tile_r
    while t >= lo:
        if rows % t == 0:
            return t
        t -= sublane_mult
    return tile_r


def identity_copy_pallas(x: jax.Array) -> jax.Array:
    """Materialized (non-aliased) copy of `x` via a lane-dense Pallas kernel."""
    orig_shape = x.shape
    n = x.size
    if n == 0:
        return x

    itemsize = jnp.dtype(x.dtype).itemsize
    # Sub-32-bit dtypes pack along sublanes: keep the sublane tile a multiple
    # of the packing factor.
    sublane_mult = {4: 8, 2: 16, 1: 32}.get(itemsize, 8)
    target_tile_bytes, vmem_limit = _vmem_budget()

    w = _pick_lane_width(n)
    if w is None:
        # Element count not divisible by 128: still tile over rows using the
        # widest divisor (last block dim == full array dim, so always legal).
        w = _largest_divisor_leq(n, 2048)
    rows = n // w
    x2d = x.reshape(rows, w)

    tile_r = _choose_tile_rows(rows, w * itemsize, sublane_mult, target_tile_bytes)
    block = (tile_r, w)
    grid = (pl.cdiv(rows, tile_r),)

    out2d = pl.pallas_call(
        _identity_kernel,
        out_shape=jax.ShapeDtypeStruct(x2d.shape, x2d.dtype),
        grid=grid,
        in_specs=[pl.BlockSpec(block, lambda i: (i, 0))],
        out_specs=pl.BlockSpec(block, lambda i: (i, 0)),
        compiler_params=pltpu.CompilerParams(
            dimension_semantics=("parallel",),
            vmem_limit_bytes=vmem_limit,
        ),
    )(x2d)
    return out2d.reshape(orig_shape)


class PositionalEncoding:
    """Identity encoding (does not modify input) — Pallas TPU version."""

    def __init__(self, in_dim: int) -> None:
        if in_dim <= 0:
            raise ValueError("Input dimension should be greater than zero")
        self.in_dim = in_dim

    def get_out_dim(self) -> int:
        if self.in_dim is None:
            raise ValueError("Input dimension has not been set")
        return self.in_dim

    def __call__(self, in_tensor: jax.Array, *, force_kernel: bool = False) -> jax.Array:
        assert in_tensor.shape[-1] == self.in_dim
        # Forward is the identity: optimal implementation returns the input
        # directly (no kernel launch, no HBM round trip).
        if not force_kernel:
            return in_tensor
        # Explicitly requested materialized copy via the Pallas kernel.
        return identity_copy_pallas(in_tensor)


if __name__ == "__main__":
    key = jax.random.PRNGKey(0)

    # Small shape implied by the module: batch=2, seq=8, hidden(in_dim)=32.
    in_dim = 32
    x = jax.random.normal(key, (2, 8, in_dim), dtype=jnp.float32)

    enc = PositionalEncoding(in_dim)

    # 1) Default (optimal) path: identity returns the input untouched.
    y = jax.block_until_ready(enc(x))
    assert y.shape == x.shape and y.dtype == x.dtype
    assert jnp.array_equal(y, x)
    assert enc.get_out_dim() == in_dim

    # 2) Kernel path on the small input (single lane-dense block, 512 elems).
    y_k = jax.block_until_ready(enc(x, force_kernel=True))
    assert y_k.shape == x.shape and y_k.dtype == x.dtype
    assert jnp.array_equal(y_k, x)

    # 3) Larger f32 input: lane-dense (512, 2048) view, >= 2 "parallel" grid
    #    steps, non-aliased materialized copy.
    in_dim_big = 1024
    enc_big = PositionalEncoding(in_dim_big)
    x_big = jax.random.normal(jax.random.PRNGKey(0), (4, 256, in_dim_big),
                              dtype=jnp.float32)
    y_big = jax.block_until_ready(enc_big(x_big, force_kernel=True))
    assert y_big.shape == x_big.shape and y_big.dtype == x_big.dtype
    assert jnp.array_equal(y_big, x_big)

    # 4) bf16 input: exercises the 16-sublane packing-aware tile rounding.
    x_bf16 = x_big.astype(jnp.bfloat16)
    y_bf16 = jax.block_until_ready(enc_big(x_bf16, force_kernel=True))
    assert y_bf16.dtype == jnp.bfloat16
    assert jnp.array_equal(y_bf16, x_bf16)

    # 5) Non-128-divisible element count (2*8*33 = 528): tiled fallback path.
    enc_odd = PositionalEncoding(33)
    x_odd = jax.random.normal(jax.random.PRNGKey(0), (2, 8, 33), dtype=jnp.float32)
    y_odd = jax.block_until_ready(enc_odd(x_odd, force_kernel=True))
    assert y_odd.shape == x_odd.shape and jnp.array_equal(y_odd, x_odd)

    print("KERNEL_OK")
</pallas_src>

<mosaic_0001>
module attributes {stable_mosaic.version = 11 : i64} {
  func.func @_identity_kernel(%arg0: i32, %arg1: memref<1x512xf32, #tpu.memory_space<vmem>>, %arg2: memref<1x512xf32, #tpu.memory_space<vmem>>) attributes {dimension_semantics = [#tpu.dimension_semantics<parallel>], iteration_bounds = array<i64: 1>, scalar_prefetch = 0 : i64, scratch_operands = 0 : i64, tpu.core_type = #tpu.core_type<tc>, window_params = [{transform_indices = @transform_0, window_bounds = array<i64: 1, 512>}, {transform_indices = @transform_1, window_bounds = array<i64: 1, 512>}]} {
    %c0 = arith.constant 0 : index
    %c0_0 = arith.constant 0 : index
    %0 = vector.load %arg1[%c0, %c0_0] : memref<1x512xf32, #tpu.memory_space<vmem>>, vector<1x512xf32>
    %c0_1 = arith.constant 0 : index
    %c0_2 = arith.constant 0 : index
    %1 = vector.load %arg2[%c0_1, %c0_2] : memref<1x512xf32, #tpu.memory_space<vmem>>, vector<1x512xf32>
    tpu.vector_store %arg2[%c0_1, %c0_2], %0 {strides = array<i32>} : memref<1x512xf32, #tpu.memory_space<vmem>>, vector<1x512xf32>,
    return
  }
  func.func @transform_0(%arg0: i32) -> (i32, i32) {
    %c0_i32 = arith.constant 0 : i32
    %c0_i32_0 = arith.constant 0 : i32
    return %arg0, %c0_i32 : i32, i32
  }
  func.func @transform_1(%arg0: i32) -> (i32, i32) {
    %c0_i32 = arith.constant 0 : i32
    %c0_i32_0 = arith.constant 0 : i32
    return %arg0, %c0_i32 : i32, i32
  }
}

</mosaic_0001>

<llo_original>
// kernel: tpu_custom_call.1
$region0: #{tpu_custom_call.1}
  #allocation0 [shape = 'u32[]', space=smem, size = 0x4, offset = 0x4, fixed_abs, tag = 'smem constant byte address 0x4 - core index']
  #allocation1 [shape = 'u32[144,128]{1,0:T(1,128)}', space=vmem, size = 0x12000, scoped, tag = 'internal scratch']
  %s0 = inlined_call_operand.hbm [shape: f32[1,512], index: 0, kind: input, shape index: {}]
  %s1 = inlined_call_operand.hbm [shape: f32[1,512], index: 1, kind: output, shape index: {}]
  %s2 = sld [smem:[#allocation0]]
  $region18: #{tpu_custom_call.1} parent=0
    _
  %s4 = ssub.s32 1, %s2
  %s5 = scalar_select 0, %s4, %s2
  $region1: #{tpu_custom_call.1} parent=0
    #allocation2 [shape = 'u8[2048]{0}', space=vmem, size = 0x800, scoped, tag = 'input window, operand 0, single buffered']
    #allocation3 [shape = 's32[1]{0}', space=sflag, size = 0x4, scoped, tag = 'scoped memory for tpu_custom_call.1']
    #allocation4 [shape = 's32[1]{0}', space=sflag, size = 0x4, scoped, tag = 'scoped memory for tpu_custom_call.1']
    #allocation5 [shape = 'u8[2048]{0}', space=vmem, size = 0x800, scoped, tag = 'output window, operand 0, single buffered']
    %6 = vsyncpa [#allocation3], 0
    %7 = vsyncpa [#allocation4], 0
    // Predicated region
    $region2: #{tpu_custom_call.1} parent=1 // pred_check
      _
    $region3: #{tpu_custom_call.1} parent=1 // pred_check_branch
      %9 = sbr.rel (0) target = $region5
    $region4: #{tpu_custom_call.1} parent=1 // pred_region
      %s11 = ssub.s32 64, 64
      %12 = vsyncadd [#allocation3], %s11
      %s14 = sshll.u32 [#allocation2], 4
      %s15 = int_to_ptr.vmem [resolvable:$true] %s14
      %17 = dma.hbm_to_vmem [thread:$0]  %s0, 64, %s15, [#allocation3]
    $region5: #{tpu_custom_call.1} parent=1 // pred_fallthru
      _
    // Predicated region
    $region6: #{tpu_custom_call.1} parent=1 // pred_check
      _
    $region7: #{tpu_custom_call.1} parent=1 // pred_check_branch
      %19 = sbr.rel (0) target = $region9
    $region8: #{tpu_custom_call.1} parent=1 // pred_region
      %20 = dma.done [#allocation3], 64
    $region9: #{tpu_custom_call.1} parent=1 // pred_fallthru
      _
    %v21 = vld [vmem:[#allocation2] sm:$0xf]
    %v22 = vlaneseq
    %vm23 = vcmp.ge.s32.totalorder %v22, 0
    %vm24 = vcmp.lt.s32.totalorder %v22, 512
    %vm25 = vmand %vm23, %vm24
    %26 = vst.msk [vmem:[#allocation5] sm:$0xf] %vm25, %v21
    // Predicated region
    $region10: #{tpu_custom_call.1} parent=1 // pred_check
      _
    $region11: #{tpu_custom_call.1} parent=1 // pred_check_branch
      %28 = sbr.rel (0) target = $region13
    $region12: #{tpu_custom_call.1} parent=1 // pred_region
      %s30 = ssub.s32 64, 64
      %31 = vsyncadd [#allocation4], %s30
      %s33 = sshll.u32 [#allocation5], 4
      %s34 = int_to_ptr.vmem [resolvable:$true] %s33
      %36 = dma.vmem_to_hbm [thread:$0]  %s34, 64, %s1, [#allocation4]
    $region13: #{tpu_custom_call.1} parent=1 // pred_fallthru
      _
    // Predicated region
    $region14: #{tpu_custom_call.1} parent=1 // pred_check
      _
    $region15: #{tpu_custom_call.1} parent=1 // pred_check_branch
      %38 = sbr.rel (0) target = $region17
    $region16: #{tpu_custom_call.1} parent=1 // pred_region
      %39 = dma.done [#allocation4], 64
    $region17: #{tpu_custom_call.1} parent=1 // pred_fallthru
      _
    %40 = vsyncpa [#allocation3], 1
    %41 = vsyncpa [#allocation4], 1

</llo_original>
